<compile_context>
chip_gen: v5e
topology: v5e:2x2
jax: 0.10.0
libtpu: 0.0.40
codegen_flags: <defaults>
</compile_context>

<pallas_src>
import jax
import jax.numpy as jnp
from jax.experimental import pallas as pl
from jax.experimental.pallas import tpu as pltpu

# ---- model hyperparameters (small, consistent with the module) ----
DIM = 32          # model dim
CONTEXT_DIM = 32  # context dim (defaults to dim)
HEADS = 4
DIM_HEAD = 16
INNER_DIM = HEADS * DIM_HEAD   # 64
SCALE = DIM_HEAD ** (-0.5)
LN_EPS = 1e-5


def cross_attention_kernel(x_ref, ctx_ref, w_in_ref, w_out_ref, o_ref):
    Bt, N, D = x_ref.shape
    J = ctx_ref.shape[1]

    # --- LayerNorm over the feature dim (gamma and head scale folded into wq) ---
    x = x_ref[...].reshape(Bt * N, D)
    mean = jnp.mean(x, axis=-1, keepdims=True)
    var = jnp.mean((x - mean) ** 2, axis=-1, keepdims=True)
    xn = (x - mean) * jax.lax.rsqrt(var + LN_EPS)                      # (Bt*N, D)

    # Packed weights: static lane slices of a single VMEM-resident tile (cheap views).
    w_in = w_in_ref[...]                                               # (D, 96)
    wq = w_in[:, :INNER_DIM]                                           # (D, 64), pre-scaled
    wkv = w_in[:, INNER_DIM:]                                          # (D, 32)
    w_out = w_out_ref[...]                                             # (64, D)

    # --- projections: two MXU matmuls over all Bt*N / Bt*J rows ---
    q = jnp.dot(xn, wq, preferred_element_type=jnp.float32)            # (Bt*N, H*Dh)
    ctx = ctx_ref[...].reshape(Bt * J, CONTEXT_DIM)
    kv = jnp.dot(ctx, wkv, preferred_element_type=jnp.float32)         # (Bt*J, 2*Dh)
    kv = kv.reshape(Bt, J, 2 * DIM_HEAD)
    k = kv[..., :DIM_HEAD]                                             # within-vreg lane slices
    v = kv[..., DIM_HEAD:]

    # --- per-head attention, fully unrolled (H=4); data stays lane-resident ---
    # Head h is a static lane slice of q; the head merge is replaced by summing
    # o_h @ w_out[h*Dh:(h+1)*Dh, :], avoiding any lane<->sublane relayout.
    acc = jnp.zeros((Bt * N, D), dtype=jnp.float32)
    for h in range(HEADS):
        q_h = q[:, h * DIM_HEAD:(h + 1) * DIM_HEAD].reshape(Bt, N, DIM_HEAD)
        sim = jnp.einsum('bnd,bjd->bnj', q_h, k,
                         preferred_element_type=jnp.float32)           # (Bt, N, J)
        sim = sim - jnp.max(sim, axis=-1, keepdims=True)
        p = jnp.exp(sim)
        inv_l = 1.0 / jnp.sum(p, axis=-1, keepdims=True)               # exact reciprocal
        o_h = jnp.einsum('bnj,bjd->bnd', p, v,
                         preferred_element_type=jnp.float32) * inv_l   # deferred normalization
        acc = acc + jnp.dot(o_h.reshape(Bt * N, DIM_HEAD),
                            w_out[h * DIM_HEAD:(h + 1) * DIM_HEAD, :],
                            preferred_element_type=jnp.float32)

    o_ref[...] = acc.reshape(Bt, N, D)


def _choose_num_blocks(B, N):
    # The grid is a SERIAL loop on v5e/v6e (one TensorCore): splitting the batch only
    # adds ~0.35 us/step pipeline overhead and extra DMA descriptors. A 2-way split
    # pays off only on v7x (2 TCs, sharded via dimension_semantics="parallel") and
    # only once per-step work is large enough to amortize the overhead; for very
    # large B*N*J one would additionally cap Bt against v7x's 64 MiB VMEM and raise
    # vmem_limit_bytes. At the test shapes (B*N = 16 rows) a single step wins everywhere.
    if B % 2 == 0 and B * N >= 2048:
        return 2
    return 1


@jax.jit
def cross_attention(x, context, gamma, wq_t, wkv_t, wout_t, attn_mask=None):
    # attn_mask intentionally unused (the reference forward never uses it).
    del attn_mask
    B, N, _ = x.shape
    _, J, _ = context.shape

    # Fold LayerNorm gamma and the Dh^-0.5 scale into the q weight (free at trace time),
    # then pack [wq_eff | wkv] into one slab: 1 weight DMA/BlockSpec instead of 3, and no
    # narrow (32,16) tiles padding out to (32,128). wout keeps its own input (in-dim 64).
    wq_eff = (gamma[:, None] * wq_t) * SCALE
    w_in = jnp.concatenate([wq_eff, wkv_t], axis=1)          # (DIM, INNER_DIM + 2*DIM_HEAD)

    num_blocks = _choose_num_blocks(B, N)
    Bt = B // num_blocks

    return pl.pallas_call(
        cross_attention_kernel,
        out_shape=jax.ShapeDtypeStruct((B, N, DIM), jnp.float32),
        grid_spec=pltpu.PrefetchScalarGridSpec(
            num_scalar_prefetch=0,
            grid=(num_blocks,),
            in_specs=[
                pl.BlockSpec((Bt, N, DIM), lambda b: (b, 0, 0)),
                pl.BlockSpec((Bt, J, CONTEXT_DIM), lambda b: (b, 0, 0)),
                # Weights: constant index_map -> same block every step, stays resident.
                pl.BlockSpec((DIM, INNER_DIM + 2 * DIM_HEAD), lambda b: (0, 0)),
                pl.BlockSpec((INNER_DIM, DIM), lambda b: (0, 0)),
            ],
            out_specs=pl.BlockSpec((Bt, N, DIM), lambda b: (b, 0, 0)),
        ),
        compiler_params=pltpu.CompilerParams(
            dimension_semantics=("parallel",)),
    )(x, context, w_in, wout_t)


def cross_attention_ref(x, context, gamma, wq_t, wkv_t, wout_t):
    """Pure-JAX reference mirroring the PyTorch forward."""
    mean = jnp.mean(x, axis=-1, keepdims=True)
    var = jnp.mean((x - mean) ** 2, axis=-1, keepdims=True)
    xn = (x - mean) / jnp.sqrt(var + LN_EPS) * gamma
    q = xn @ wq_t                                   # (B, N, H*Dh)
    B, N, _ = q.shape
    q = q.reshape(B, N, HEADS, DIM_HEAD).transpose(0, 2, 1, 3) * SCALE
    kv = context @ wkv_t                            # (B, J, 2*Dh)
    k, v = kv[..., :DIM_HEAD], kv[..., DIM_HEAD:]
    sim = jnp.einsum('bhid,bjd->bhij', q, k)
    sim = sim - jnp.max(sim, axis=-1, keepdims=True)
    attn = jax.nn.softmax(sim, axis=-1)
    out = jnp.einsum('bhij,bjd->bhid', attn, v)
    out = out.transpose(0, 2, 1, 3).reshape(B, N, INNER_DIM)
    return out @ wout_t


if __name__ == "__main__":
    key = jax.random.PRNGKey(0)
    k_x, k_c, k_q, k_kv, k_o = jax.random.split(key, 5)

    B, N, J = 2, 8, 16
    x = jax.random.normal(k_x, (B, N, DIM), dtype=jnp.float32)
    context = jax.random.normal(k_c, (B, J, CONTEXT_DIM), dtype=jnp.float32)
    attn_mask = jnp.ones((B, N, J), dtype=jnp.bool_)   # unused by the forward

    # Deterministic parameter init (nn.Linear-style scaling), pre-transposed to (in, out).
    gamma = jnp.ones((DIM,), dtype=jnp.float32)        # LayerNorm gamma (beta buffer = 0)
    wq_t = jax.random.normal(k_q, (DIM, INNER_DIM), dtype=jnp.float32) * (DIM ** -0.5)
    wkv_t = jax.random.normal(k_kv, (CONTEXT_DIM, 2 * DIM_HEAD), dtype=jnp.float32) * (CONTEXT_DIM ** -0.5)
    wout_t = jax.random.normal(k_o, (INNER_DIM, DIM), dtype=jnp.float32) * (INNER_DIM ** -0.5)

    out = cross_attention(x, context, gamma, wq_t, wkv_t, wout_t, attn_mask)
    out = jax.block_until_ready(out)

    ref = cross_attention_ref(x, context, gamma, wq_t, wkv_t, wout_t)
    assert out.shape == (B, N, DIM)
    assert jnp.allclose(out, ref, atol=1e-4, rtol=1e-4), "Pallas output mismatch vs JAX reference"

    # TODO(synk): parallel_ff / SwiGLU branch not implemented (module default parallel_ff=False).
    print("KERNEL_OK")
</pallas_src>

<mosaic_0001>
module attributes {stable_mosaic.version = 11 : i64} {
  func.func @cross_attention_kernel(%arg0: i32, %arg1: memref<2x8x32xf32, #tpu.memory_space<vmem>>, %arg2: memref<2x16x32xf32, #tpu.memory_space<vmem>>, %arg3: memref<32x96xf32, #tpu.memory_space<vmem>>, %arg4: memref<64x32xf32, #tpu.memory_space<vmem>>, %arg5: memref<2x8x32xf32, #tpu.memory_space<vmem>>) attributes {dimension_semantics = [#tpu.dimension_semantics<parallel>], iteration_bounds = array<i64: 1>, scalar_prefetch = 0 : i64, scratch_operands = 0 : i64, tpu.core_type = #tpu.core_type<tc>, window_params = [{transform_indices = @transform_0, window_bounds = array<i64: 2, 8, 32>}, {transform_indices = @transform_1, window_bounds = array<i64: 2, 16, 32>}, {pipeline_mode = #tpu.pipeline_mode<synchronous>, transform_indices = @transform_2, window_bounds = array<i64: 32, 96>}, {pipeline_mode = #tpu.pipeline_mode<synchronous>, transform_indices = @transform_3, window_bounds = array<i64: 64, 32>}, {transform_indices = @transform_4, window_bounds = array<i64: 2, 8, 32>}]} {
    %c0 = arith.constant 0 : index
    %c0_0 = arith.constant 0 : index
    %c0_1 = arith.constant 0 : index
    %0 = vector.load %arg1[%c0, %c0_0, %c0_1] : memref<2x8x32xf32, #tpu.memory_space<vmem>>, vector<2x8x32xf32>
    %1 = vector.shape_cast %0 : vector<2x8x32xf32> to vector<16x32xf32>
    %cst = arith.constant dense<0.000000e+00> : vector<16xf32>
    %2 = vector.multi_reduction <add>, %1, %cst [1] : vector<16x32xf32> to vector<16xf32>
    %3 = vector.shape_cast %2 : vector<16xf32> to vector<16x1xf32>
    %cst_2 = arith.constant 3.200000e+01 : f32
    %4 = vector.broadcast %cst_2 : f32 to vector<16x1xf32>
    %5 = arith.divf %3, %4 : vector<16x1xf32>
    %6 = vector.broadcast %5 : vector<16x1xf32> to vector<16x32xf32>
    %7 = arith.subf %1, %6 : vector<16x32xf32>
    %8 = arith.mulf %7, %7 : vector<16x32xf32>
    %cst_3 = arith.constant dense<0.000000e+00> : vector<16xf32>
    %9 = vector.multi_reduction <add>, %8, %cst_3 [1] : vector<16x32xf32> to vector<16xf32>
    %10 = vector.shape_cast %9 : vector<16xf32> to vector<16x1xf32>
    %cst_4 = arith.constant 3.200000e+01 : f32
    %11 = vector.broadcast %cst_4 : f32 to vector<16x1xf32>
    %12 = arith.divf %10, %11 : vector<16x1xf32>
    %13 = vector.broadcast %5 : vector<16x1xf32> to vector<16x32xf32>
    %14 = arith.subf %1, %13 : vector<16x32xf32>
    %cst_5 = arith.constant 9.99999974E-6 : f32
    %15 = vector.broadcast %cst_5 : f32 to vector<16x1xf32>
    %16 = arith.addf %12, %15 : vector<16x1xf32>
    %17 = math.rsqrt %16 : vector<16x1xf32>
    %18 = vector.broadcast %17 : vector<16x1xf32> to vector<16x32xf32>
    %19 = arith.mulf %14, %18 : vector<16x32xf32>
    %c0_6 = arith.constant 0 : index
    %c0_7 = arith.constant 0 : index
    %20 = vector.load %arg3[%c0_6, %c0_7] : memref<32x96xf32, #tpu.memory_space<vmem>>, vector<32x96xf32>
    %21 = vector.extract_strided_slice %20 {offsets = [0, 0], sizes = [32, 64], strides = [1, 1]} : vector<32x96xf32> to vector<32x64xf32>
    %22 = vector.extract_strided_slice %20 {offsets = [0, 64], sizes = [32, 32], strides = [1, 1]} : vector<32x96xf32> to vector<32x32xf32>
    %c0_8 = arith.constant 0 : index
    %c0_9 = arith.constant 0 : index
    %23 = vector.load %arg4[%c0_8, %c0_9] : memref<64x32xf32, #tpu.memory_space<vmem>>, vector<64x32xf32>
    %cst_10 = arith.constant dense<0.000000e+00> : vector<16x64xf32>
    %24 = tpu.matmul %19, %21, %cst_10 {dimension_numbers = #tpu.dot_dimension_numbers<[1], [0], [0], [1], [0, 0, 1, 1], [], []>} : vector<16x32xf32>, vector<32x64xf32>, vector<16x64xf32> -> vector<16x64xf32>
    %c0_11 = arith.constant 0 : index
    %c0_12 = arith.constant 0 : index
    %c0_13 = arith.constant 0 : index
    %25 = vector.load %arg2[%c0_11, %c0_12, %c0_13] : memref<2x16x32xf32, #tpu.memory_space<vmem>>, vector<2x16x32xf32>
    %26 = vector.shape_cast %25 : vector<2x16x32xf32> to vector<32x32xf32>
    %cst_14 = arith.constant dense<0.000000e+00> : vector<32x32xf32>
    %27 = tpu.matmul %26, %22, %cst_14 {dimension_numbers = #tpu.dot_dimension_numbers<[1], [0], [0], [1], [0, 0, 1, 1], [], []>} : vector<32x32xf32>, vector<32x32xf32>, vector<32x32xf32> -> vector<32x32xf32>
    %28 = vector.shape_cast %27 : vector<32x32xf32> to vector<2x16x32xf32>
    %29 = vector.extract_strided_slice %28 {offsets = [0, 0, 0], sizes = [2, 16, 16], strides = [1, 1, 1]} : vector<2x16x32xf32> to vector<2x16x16xf32>
    %30 = vector.extract_strided_slice %28 {offsets = [0, 0, 16], sizes = [2, 16, 16], strides = [1, 1, 1]} : vector<2x16x32xf32> to vector<2x16x16xf32>
    %cst_15 = arith.constant 0.000000e+00 : f32
    %31 = vector.broadcast %cst_15 : f32 to vector<16x32xf32>
    %32 = vector.extract_strided_slice %24 {offsets = [0, 0], sizes = [16, 16], strides = [1, 1]} : vector<16x64xf32> to vector<16x16xf32>
    %33 = vector.shape_cast %32 : vector<16x16xf32> to vector<2x8x16xf32>
    "tpu.trace_start"() <{level = 10 : i32, message = "bnd,bjd->bnj"}> : () -> ()
    %cst_16 = arith.constant dense<0.000000e+00> : vector<2x8x16xf32>
    %34 = tpu.matmul %33, %29, %cst_16 {dimension_numbers = #tpu.dot_dimension_numbers<[2], [2], [1], [1], [0, 0, 0, 1, 1, 1], [0], [0]>} : vector<2x8x16xf32>, vector<2x16x16xf32>, vector<2x8x16xf32> -> vector<2x8x16xf32>
    "tpu.trace_stop"() : () -> ()
    %cst_17 = arith.constant dense<0xFF800000> : vector<2x8xf32>
    %35 = vector.multi_reduction <maximumf>, %34, %cst_17 [2] : vector<2x8x16xf32> to vector<2x8xf32>
    %36 = vector.shape_cast %35 : vector<2x8xf32> to vector<2x8x1xf32>
    %37 = vector.broadcast %36 : vector<2x8x1xf32> to vector<2x8x16xf32>
    %38 = arith.subf %34, %37 : vector<2x8x16xf32>
    %39 = math.exp %38 : vector<2x8x16xf32>
    %cst_18 = arith.constant dense<0.000000e+00> : vector<2x8xf32>
    %40 = vector.multi_reduction <add>, %39, %cst_18 [2] : vector<2x8x16xf32> to vector<2x8xf32>
    %41 = vector.shape_cast %40 : vector<2x8xf32> to vector<2x8x1xf32>
    %cst_19 = arith.constant 1.000000e+00 : f32
    %42 = vector.broadcast %cst_19 : f32 to vector<2x8x1xf32>
    %43 = arith.divf %42, %41 : vector<2x8x1xf32>
    "tpu.trace_start"() <{level = 10 : i32, message = "bnj,bjd->bnd"}> : () -> ()
    %cst_20 = arith.constant dense<0.000000e+00> : vector<2x8x16xf32>
    %44 = tpu.matmul %39, %30, %cst_20 {dimension_numbers = #tpu.dot_dimension_numbers<[2], [1], [1], [2], [0, 0, 0, 1, 1, 2], [0], [0]>} : vector<2x8x16xf32>, vector<2x16x16xf32>, vector<2x8x16xf32> -> vector<2x8x16xf32>
    "tpu.trace_stop"() : () -> ()
    %45 = vector.broadcast %43 : vector<2x8x1xf32> to vector<2x8x16xf32>
    %46 = arith.mulf %44, %45 : vector<2x8x16xf32>
    %47 = vector.shape_cast %46 : vector<2x8x16xf32> to vector<16x16xf32>
    %48 = vector.extract_strided_slice %23 {offsets = [0, 0], sizes = [16, 32], strides = [1, 1]} : vector<64x32xf32> to vector<16x32xf32>
    %cst_21 = arith.constant dense<0.000000e+00> : vector<16x32xf32>
    %49 = tpu.matmul %47, %48, %cst_21 {dimension_numbers = #tpu.dot_dimension_numbers<[1], [0], [0], [1], [0, 0, 1, 1], [], []>} : vector<16x16xf32>, vector<16x32xf32>, vector<16x32xf32> -> vector<16x32xf32>
    %50 = arith.addf %31, %49 : vector<16x32xf32>
    %51 = vector.extract_strided_slice %24 {offsets = [0, 16], sizes = [16, 16], strides = [1, 1]} : vector<16x64xf32> to vector<16x16xf32>
    %52 = vector.shape_cast %51 : vector<16x16xf32> to vector<2x8x16xf32>
    "tpu.trace_start"() <{level = 10 : i32, message = "bnd,bjd->bnj"}> : () -> ()
    %cst_22 = arith.constant dense<0.000000e+00> : vector<2x8x16xf32>
    %53 = tpu.matmul %52, %29, %cst_22 {dimension_numbers = #tpu.dot_dimension_numbers<[2], [2], [1], [1], [0, 0, 0, 1, 1, 1], [0], [0]>} : vector<2x8x16xf32>, vector<2x16x16xf32>, vector<2x8x16xf32> -> vector<2x8x16xf32>
    "tpu.trace_stop"() : () -> ()
    %cst_23 = arith.constant dense<0xFF800000> : vector<2x8xf32>
    %54 = vector.multi_reduction <maximumf>, %53, %cst_23 [2] : vector<2x8x16xf32> to vector<2x8xf32>
    %55 = vector.shape_cast %54 : vector<2x8xf32> to vector<2x8x1xf32>
    %56 = vector.broadcast %55 : vector<2x8x1xf32> to vector<2x8x16xf32>
    %57 = arith.subf %53, %56 : vector<2x8x16xf32>
    %58 = math.exp %57 : vector<2x8x16xf32>
    %cst_24 = arith.constant dense<0.000000e+00> : vector<2x8xf32>
    %59 = vector.multi_reduction <add>, %58, %cst_24 [2] : vector<2x8x16xf32> to vector<2x8xf32>
    %60 = vector.shape_cast %59 : vector<2x8xf32> to vector<2x8x1xf32>
    %cst_25 = arith.constant 1.000000e+00 : f32
    %61 = vector.broadcast %cst_25 : f32 to vector<2x8x1xf32>
    %62 = arith.divf %61, %60 : vector<2x8x1xf32>
    "tpu.trace_start"() <{level = 10 : i32, message = "bnj,bjd->bnd"}> : () -> ()
    %cst_26 = arith.constant dense<0.000000e+00> : vector<2x8x16xf32>
    %63 = tpu.matmul %58, %30, %cst_26 {dimension_numbers = #tpu.dot_dimension_numbers<[2], [1], [1], [2], [0, 0, 0, 1, 1, 2], [0], [0]>} : vector<2x8x16xf32>, vector<2x16x16xf32>, vector<2x8x16xf32> -> vector<2x8x16xf32>
    "tpu.trace_stop"() : () -> ()
    %64 = vector.broadcast %62 : vector<2x8x1xf32> to vector<2x8x16xf32>
    %65 = arith.mulf %63, %64 : vector<2x8x16xf32>
    %66 = vector.shape_cast %65 : vector<2x8x16xf32> to vector<16x16xf32>
    %67 = vector.extract_strided_slice %23 {offsets = [16, 0], sizes = [16, 32], strides = [1, 1]} : vector<64x32xf32> to vector<16x32xf32>
    %cst_27 = arith.constant dense<0.000000e+00> : vector<16x32xf32>
    %68 = tpu.matmul %66, %67, %cst_27 {dimension_numbers = #tpu.dot_dimension_numbers<[1], [0], [0], [1], [0, 0, 1, 1], [], []>} : vector<16x16xf32>, vector<16x32xf32>, vector<16x32xf32> -> vector<16x32xf32>
    %69 = arith.addf %50, %68 : vector<16x32xf32>
    %70 = vector.extract_strided_slice %24 {offsets = [0, 32], sizes = [16, 16], strides = [1, 1]} : vector<16x64xf32> to vector<16x16xf32>
    %71 = vector.shape_cast %70 : vector<16x16xf32> to vector<2x8x16xf32>
    "tpu.trace_start"() <{level = 10 : i32, message = "bnd,bjd->bnj"}> : () -> ()
    %cst_28 = arith.constant dense<0.000000e+00> : vector<2x8x16xf32>
    %72 = tpu.matmul %71, %29, %cst_28 {dimension_numbers = #tpu.dot_dimension_numbers<[2], [2], [1], [1], [0, 0, 0, 1, 1, 1], [0], [0]>} : vector<2x8x16xf32>, vector<2x16x16xf32>, vector<2x8x16xf32> -> vector<2x8x16xf32>
    "tpu.trace_stop"() : () -> ()
    %cst_29 = arith.constant dense<0xFF800000> : vector<2x8xf32>
    %73 = vector.multi_reduction <maximumf>, %72, %cst_29 [2] : vector<2x8x16xf32> to vector<2x8xf32>
    %74 = vector.shape_cast %73 : vector<2x8xf32> to vector<2x8x1xf32>
    %75 = vector.broadcast %74 : vector<2x8x1xf32> to vector<2x8x16xf32>
    %76 = arith.subf %72, %75 : vector<2x8x16xf32>
    %77 = math.exp %76 : vector<2x8x16xf32>
    %cst_30 = arith.constant dense<0.000000e+00> : vector<2x8xf32>
    %78 = vector.multi_reduction <add>, %77, %cst_30 [2] : vector<2x8x16xf32> to vector<2x8xf32>
    %79 = vector.shape_cast %78 : vector<2x8xf32> to vector<2x8x1xf32>
    %cst_31 = arith.constant 1.000000e+00 : f32
    %80 = vector.broadcast %cst_31 : f32 to vector<2x8x1xf32>
    %81 = arith.divf %80, %79 : vector<2x8x1xf32>
    "tpu.trace_start"() <{level = 10 : i32, message = "bnj,bjd->bnd"}> : () -> ()
    %cst_32 = arith.constant dense<0.000000e+00> : vector<2x8x16xf32>
    %82 = tpu.matmul %77, %30, %cst_32 {dimension_numbers = #tpu.dot_dimension_numbers<[2], [1], [1], [2], [0, 0, 0, 1, 1, 2], [0], [0]>} : vector<2x8x16xf32>, vector<2x16x16xf32>, vector<2x8x16xf32> -> vector<2x8x16xf32>
    "tpu.trace_stop"() : () -> ()
    %83 = vector.broadcast %81 : vector<2x8x1xf32> to vector<2x8x16xf32>
    %84 = arith.mulf %82, %83 : vector<2x8x16xf32>
    %85 = vector.shape_cast %84 : vector<2x8x16xf32> to vector<16x16xf32>
    %86 = vector.extract_strided_slice %23 {offsets = [32, 0], sizes = [16, 32], strides = [1, 1]} : vector<64x32xf32> to vector<16x32xf32>
    %cst_33 = arith.constant dense<0.000000e+00> : vector<16x32xf32>
    %87 = tpu.matmul %85, %86, %cst_33 {dimension_numbers = #tpu.dot_dimension_numbers<[1], [0], [0], [1], [0, 0, 1, 1], [], []>} : vector<16x16xf32>, vector<16x32xf32>, vector<16x32xf32> -> vector<16x32xf32>
    %88 = arith.addf %69, %87 : vector<16x32xf32>
    %89 = vector.extract_strided_slice %24 {offsets = [0, 48], sizes = [16, 16], strides = [1, 1]} : vector<16x64xf32> to vector<16x16xf32>
    %90 = vector.shape_cast %89 : vector<16x16xf32> to vector<2x8x16xf32>
    "tpu.trace_start"() <{level = 10 : i32, message = "bnd,bjd->bnj"}> : () -> ()
    %cst_34 = arith.constant dense<0.000000e+00> : vector<2x8x16xf32>
    %91 = tpu.matmul %90, %29, %cst_34 {dimension_numbers = #tpu.dot_dimension_numbers<[2], [2], [1], [1], [0, 0, 0, 1, 1, 1], [0], [0]>} : vector<2x8x16xf32>, vector<2x16x16xf32>, vector<2x8x16xf32> -> vector<2x8x16xf32>
    "tpu.trace_stop"() : () -> ()
    %cst_35 = arith.constant dense<0xFF800000> : vector<2x8xf32>
    %92 = vector.multi_reduction <maximumf>, %91, %cst_35 [2] : vector<2x8x16xf32> to vector<2x8xf32>
    %93 = vector.shape_cast %92 : vector<2x8xf32> to vector<2x8x1xf32>
    %94 = vector.broadcast %93 : vector<2x8x1xf32> to vector<2x8x16xf32>
    %95 = arith.subf %91, %94 : vector<2x8x16xf32>
    %96 = math.exp %95 : vector<2x8x16xf32>
    %cst_36 = arith.constant dense<0.000000e+00> : vector<2x8xf32>
    %97 = vector.multi_reduction <add>, %96, %cst_36 [2] : vector<2x8x16xf32> to vector<2x8xf32>
    %98 = vector.shape_cast %97 : vector<2x8xf32> to vector<2x8x1xf32>
    %cst_37 = arith.constant 1.000000e+00 : f32
    %99 = vector.broadcast %cst_37 : f32 to vector<2x8x1xf32>
    %100 = arith.divf %99, %98 : vector<2x8x1xf32>
    "tpu.trace_start"() <{level = 10 : i32, message = "bnj,bjd->bnd"}> : () -> ()
    %cst_38 = arith.constant dense<0.000000e+00> : vector<2x8x16xf32>
    %101 = tpu.matmul %96, %30, %cst_38 {dimension_numbers = #tpu.dot_dimension_numbers<[2], [1], [1], [2], [0, 0, 0, 1, 1, 2], [0], [0]>} : vector<2x8x16xf32>, vector<2x16x16xf32>, vector<2x8x16xf32> -> vector<2x8x16xf32>
    "tpu.trace_stop"() : () -> ()
    %102 = vector.broadcast %100 : vector<2x8x1xf32> to vector<2x8x16xf32>
    %103 = arith.mulf %101, %102 : vector<2x8x16xf32>
    %104 = vector.shape_cast %103 : vector<2x8x16xf32> to vector<16x16xf32>
    %105 = vector.extract_strided_slice %23 {offsets = [48, 0], sizes = [16, 32], strides = [1, 1]} : vector<64x32xf32> to vector<16x32xf32>
    %cst_39 = arith.constant dense<0.000000e+00> : vector<16x32xf32>
    %106 = tpu.matmul %104, %105, %cst_39 {dimension_numbers = #tpu.dot_dimension_numbers<[1], [0], [0], [1], [0, 0, 1, 1], [], []>} : vector<16x16xf32>, vector<16x32xf32>, vector<16x32xf32> -> vector<16x32xf32>
    %107 = arith.addf %88, %106 : vector<16x32xf32>
    %108 = vector.shape_cast %107 : vector<16x32xf32> to vector<2x8x32xf32>
    %c0_40 = arith.constant 0 : index
    %c0_41 = arith.constant 0 : index
    %c0_42 = arith.constant 0 : index
    %109 = vector.load %arg5[%c0_40, %c0_41, %c0_42] : memref<2x8x32xf32, #tpu.memory_space<vmem>>, vector<2x8x32xf32>
    tpu.vector_store %arg5[%c0_40, %c0_41, %c0_42], %108 {strides = array<i32>} : memref<2x8x32xf32, #tpu.memory_space<vmem>>, vector<2x8x32xf32>,
    return
  }
  func.func @transform_0(%arg0: i32) -> (i32, i32, i32) {
    %c0_i32 = arith.constant 0 : i32
    %c0_i32_0 = arith.constant 0 : i32
    %c0_i32_1 = arith.constant 0 : i32
    return %arg0, %c0_i32, %c0_i32_0 : i32, i32, i32
  }
  func.func @transform_1(%arg0: i32) -> (i32, i32, i32) {
    %c0_i32 = arith.constant 0 : i32
    %c0_i32_0 = arith.constant 0 : i32
    %c0_i32_1 = arith.constant 0 : i32
    return %arg0, %c0_i32, %c0_i32_0 : i32, i32, i32
  }
  func.func @transform_2(%arg0: i32) -> (i32, i32) {
    %c0_i32 = arith.constant 0 : i32
    %c0_i32_0 = arith.constant 0 : i32
    %c0_i32_1 = arith.constant 0 : i32
    return %c0_i32, %c0_i32_0 : i32, i32
  }
  func.func @transform_3(%arg0: i32) -> (i32, i32) {
    %c0_i32 = arith.constant 0 : i32
    %c0_i32_0 = arith.constant 0 : i32
    %c0_i32_1 = arith.constant 0 : i32
    return %c0_i32, %c0_i32_0 : i32, i32
  }
  func.func @transform_4(%arg0: i32) -> (i32, i32, i32) {
    %c0_i32 = arith.constant 0 : i32
    %c0_i32_0 = arith.constant 0 : i32
    %c0_i32_1 = arith.constant 0 : i32
    return %arg0, %c0_i32, %c0_i32_0 : i32, i32, i32
  }
}

</mosaic_0001>

<llo_original>
// kernel: cross_attention.1
$region0: #{cross_attention.1}
  #allocation0 [shape = 'u32[]', space=smem, size = 0x4, offset = 0x4, fixed_abs, tag = 'smem constant byte address 0x4 - core index']
  #allocation1 [shape = 'u32[72,128]{1,0:T(1,128)}', space=vmem, size = 0x9000, scoped, tag = 'internal scratch']
  %s0 = inlined_call_operand.vmem [shape: f32[2,8,32], index: 0, kind: input, shape index: {}]
  %s1 = inlined_call_operand.vmem [shape: f32[2,16,32], index: 1, kind: input, shape index: {}]
  %s2 = inlined_call_operand.vmem [shape: f32[32,96], index: 2, kind: input, shape index: {}]
  %s3 = inlined_call_operand.vmem [shape: f32[64,32], index: 3, kind: input, shape index: {}]
  %s4 = inlined_call_operand.hbm [shape: f32[2,8,32], index: 4, kind: output, shape index: {}]
  %s5 = sld [smem:[#allocation0]]
  $region26: #{cross_attention.1} parent=0
    _
  %s7 = ssub.s32 1, %s5
  %s8 = scalar_select 0, %s7, %s5
  $region1: #{cross_attention.1} parent=0
    #allocation2 [shape = 'u8[8192]{0}', space=vmem, size = 0x2000, scoped, tag = 'output window, operand 0, single buffered']
    #allocation3 [shape = 's32[1]{0}', space=sflag, size = 0x4, scoped, tag = 'scoped memory for cross_attention.1']
    %9 = vsyncpa [#allocation3], 0
    // Predicated region
    $region2: #{cross_attention.1} parent=1 // pred_check
      _
    $region3: #{cross_attention.1} parent=1 // pred_check_branch
      %11 = sbr.rel (0) target = $region5
    $region4: #{cross_attention.1} parent=1 // pred_region
      _
    $region5: #{cross_attention.1} parent=1 // pred_fallthru
      _
    // Predicated region
    $region6: #{cross_attention.1} parent=1 // pred_check
      _
    $region7: #{cross_attention.1} parent=1 // pred_check_branch
      %13 = sbr.rel (0) target = $region9
    $region8: #{cross_attention.1} parent=1 // pred_region
      _
    $region9: #{cross_attention.1} parent=1 // pred_fallthru
      _
    // Predicated region
    $region10: #{cross_attention.1} parent=1 // pred_check
      _
    $region11: #{cross_attention.1} parent=1 // pred_check_branch
      %15 = sbr.rel (0) target = $region13
    $region12: #{cross_attention.1} parent=1 // pred_region
      _
    $region13: #{cross_attention.1} parent=1 // pred_fallthru
      _
    // Predicated region
    $region14: #{cross_attention.1} parent=1 // pred_check
      _
    $region15: #{cross_attention.1} parent=1 // pred_check_branch
      %17 = sbr.rel (0) target = $region17
    $region16: #{cross_attention.1} parent=1 // pred_region
      _
    $region17: #{cross_attention.1} parent=1 // pred_fallthru
      _
    %v18 = vld [vmem:[%s0] sm:$0xff]
    %v19 = vld [vmem:[%s0 + $0x8] sm:$0xff]
    %vm20 = vcmask 261120
    %v21 = vsel %vm20, %v18, 0.0
    %22 = vadd.xlane.f32.xlu0 %v21
    %v23 = vpop.xlane.xlu0 %22
    %v24 = vsel %vm20, %v19, 0.0
    %25 = vadd.xlane.f32.xlu0 %v24
    %v26 = vpop.xlane.xlu0 %25
    %v27 = vrcp.pop 32.0
    %v28 = vmul.f32 32.0, %v27
    %v29 = vsub.f32 1.0, %v28
    %v30 = vmul.f32 %v27, %v29
    %v31 = vadd.f32 %v27, %v30
    %vm32 = vweird.f32 %v27
    %v33 = vsel %vm32, %v27, %v31
    %v34 = vmul.f32 %v23, %v33
    %v35 = vmul.f32 %v26, %v33
    %v36 = vsub.f32 %v18, %v34
    %v37 = vsub.f32 %v19, %v35
    %v38 = vmul.f32 %v36, %v36
    %v39 = vmul.f32 %v37, %v37
    %v40 = vsel %vm20, %v38, 0.0
    %41 = vadd.xlane.f32.xlu0 %v40
    %v42 = vpop.xlane.xlu0 %41
    %v43 = vsel %vm20, %v39, 0.0
    %44 = vadd.xlane.f32.xlu0 %v43
    %v45 = vpop.xlane.xlu0 %44
    %v46 = vmul.f32 %v42, %v33
    %v47 = vmul.f32 %v45, %v33
    %v48 = vadd.f32 %v46, 1e-05
    %v49 = vadd.f32 %v47, 1e-05
    %v50 = vrsqrt.pop %v48
    %v51 = vmul.f32 %v50, %v48
    %v52 = vmul.f32 %v51, %v50
    %v53 = vmul.f32 0.5, %v52
    %v54 = vsub.f32 1.5, %v53
    %v55 = vmul.f32 %v50, %v54
    %vm56 = vweird.f32 %v48
    %vm57 = vweird.f32 %v50
    %vm58 = vmor %vm56, %vm57
    %v59 = vsel %vm58, %v50, %v55
    %v60 = vrsqrt.pop %v49
    %v61 = vmul.f32 %v60, %v49
    %v62 = vmul.f32 %v61, %v60
    %v63 = vmul.f32 0.5, %v62
    %v64 = vsub.f32 1.5, %v63
    %v65 = vmul.f32 %v60, %v64
    %vm66 = vweird.f32 %v49
    %vm67 = vweird.f32 %v60
    %vm68 = vmor %vm66, %vm67
    %v69 = vsel %vm68, %v60, %v65
    %v70 = vmul.f32 %v36, %v59
    %v71 = vmul.f32 %v37, %v69
    %v72 = vld [vmem:[%s2] sm:$0xff]
    %v73 = vld [vmem:[%s2 + $0x8] sm:$0xff]
    %v74 = vld [vmem:[%s2 + $0x10] sm:$0xff]
    %v75 = vld [vmem:[%s2 + $0x18] sm:$0xff]
    %v76 = vld [vmem:[%s3] sm:$0xff]
    %v77 = vld [vmem:[%s3 + $0x8] sm:$0xff]
    %v78 = vld [vmem:[%s3 + $0x10] sm:$0xff]
    %v79 = vld [vmem:[%s3 + $0x18] sm:$0xff]
    %v80 = vld [vmem:[%s3 + $0x20] sm:$0xff]
    %v81 = vld [vmem:[%s3 + $0x28] sm:$0xff]
    %v82 = vld [vmem:[%s3 + $0x30] sm:$0xff]
    %v83 = vld [vmem:[%s3 + $0x38] sm:$0xff]
    %v85 = vsel %vm20, %v70, 0
    %v88 = vsel %vm20, %v71, 0
    %90 = vmatpush.msra.mxu0 0.0
    %91 = vmatpush.msra.mxu0 0.0
    %92 = vmatpush.msra.mxu0 0.0
    %93 = vmatpush.msra.mxu0 0.0
    %94 = vmatpush.msra.mxu0 0.0
    %95 = vmatpush.msra.mxu0 0.0
    %96 = vmatpush.msra.mxu0 0.0
    %97 = vmatpush.msra.mxu0 0.0
    %98 = vmatpush.msra.mxu0 0.0
    %99 = vmatpush.msra.mxu0 0.0
    %100 = vmatpush.msra.mxu0 0.0
    %101 = vmatpush.msra.mxu0 0.0
    %102 = vmatpush.msra.mxu0 %v75
    %103 = vmatpush.msra.mxu0 %v74
    %104 = vmatpush.msra.mxu0 %v73
    %105 = vmatpush.msra.mxu0 %v72
    %106 = vmatmul.f32.gmra.mxu0 %v85
    %v107 = vpop.f32.mrf.mxu0
    %v108 = vadd.f32 0.0, %v107
    %109 = vmatmul.f32.gmra.mxu0 %v88
    %v110 = vpop.f32.mrf.mxu0
    %v111 = vadd.f32 0.0, %v110
    %112 = vdwg.mxu0
    %v113 = vld [vmem:[%s1] sm:$0xff]
    %v114 = vld [vmem:[%s1 + $0x8] sm:$0xff]
    %v115 = vld [vmem:[%s1 + $0x10] sm:$0xff]
    %v116 = vld [vmem:[%s1 + $0x18] sm:$0xff]
    %121 = vrot.lane.b32.xlu0 %v72, 64
    %v122 = vpop.permute.xlu0 %121
    %123 = vrot.lane.b32.xlu0 %v73, 64
    %v124 = vpop.permute.xlu0 %123
    %125 = vrot.lane.b32.xlu0 %v74, 64
    %v126 = vpop.permute.xlu0 %125
    %127 = vrot.lane.b32.xlu0 %v75, 64
    %v128 = vpop.permute.xlu0 %127
    %v134 = vsel %vm20, %v113, 0
    %v137 = vsel %vm20, %v114, 0
    %v140 = vsel %vm20, %v115, 0
    %v143 = vsel %vm20, %v116, 0
    %145 = vmatpush.msra.mxu0 0.0
    %146 = vmatpush.msra.mxu0 0.0
    %147 = vmatpush.msra.mxu0 0.0
    %148 = vmatpush.msra.mxu0 0.0
    %149 = vmatpush.msra.mxu0 0.0
    %150 = vmatpush.msra.mxu0 0.0
    %151 = vmatpush.msra.mxu0 0.0
    %152 = vmatpush.msra.mxu0 0.0
    %153 = vmatpush.msra.mxu0 0.0
    %154 = vmatpush.msra.mxu0 0.0
    %155 = vmatpush.msra.mxu0 0.0
    %156 = vmatpush.msra.mxu0 0.0
    %157 = vmatpush.msra.mxu0 %v128
    %158 = vmatpush.msra.mxu0 %v126
    %159 = vmatpush.msra.mxu0 %v124
    %160 = vmatpush.msra.mxu0 %v122
    %161 = vmatmul.f32.gmra.mxu0 %v134
    %v162 = vpop.f32.mrf.mxu0
    %v163 = vadd.f32 0.0, %v162
    %164 = vmatmul.f32.gmra.mxu0 %v137
    %v165 = vpop.f32.mrf.mxu0
    %v166 = vadd.f32 0.0, %v165
    %167 = vmatmul.f32.gmra.mxu0 %v140
    %v168 = vpop.f32.mrf.mxu0
    %v169 = vadd.f32 0.0, %v168
    %170 = vmatmul.f32.gmra.mxu0 %v143
    %v171 = vpop.f32.mrf.mxu0
    %v172 = vadd.f32 0.0, %v171
    %173 = vdwg.mxu0
    %vm174 = vcmask 130048
    %v176 = vsel %vm174, %v108, 0
    %v179 = vsel %vm174, %v163, 0
    %v182 = vsel %vm174, %v166, 0
    %184 = vmatpush.xpose.msra.mxu0 0.0
    %185 = vmatpush.xpose.msra.mxu0 0.0
    %186 = vmatpush.xpose.msra.mxu0 0.0
    %187 = vmatpush.xpose.msra.mxu0 0.0
    %188 = vmatpush.xpose.msra.mxu0 0.0
    %189 = vmatpush.xpose.msra.mxu0 0.0
    %190 = vmatpush.xpose.msra.mxu0 0.0
    %191 = vmatpush.xpose.msra.mxu0 0.0
    %192 = vmatpush.xpose.msra.mxu0 0.0
    %193 = vmatpush.xpose.msra.mxu0 0.0
    %194 = vmatpush.xpose.msra.mxu0 0.0
    %195 = vmatpush.xpose.msra.mxu0 0.0
    %196 = vmatpush.xpose.msra.mxu0 0.0
    %197 = vmatpush.xpose.msra.mxu0 0.0
    %198 = vmatpush.xpose.msra.mxu0 %v182
    %199 = vmatpush.xpose.msra.mxu0 %v179
    %200 = vmatmul.f32.gmra.mxu0 %v176
    %v201 = vpop.f32.mrf.mxu0
    %v202 = vadd.f32 0.0, %v201
    %203 = vdwg.mxu0
    %v205 = vsel %vm174, %v111, 0
    %v208 = vsel %vm174, %v169, 0
    %v211 = vsel %vm174, %v172, 0
    %213 = vmatpush.xpose.msra.mxu0 0.0
    %214 = vmatpush.xpose.msra.mxu0 0.0
    %215 = vmatpush.xpose.msra.mxu0 0.0
    %216 = vmatpush.xpose.msra.mxu0 0.0
    %217 = vmatpush.xpose.msra.mxu0 0.0
    %218 = vmatpush.xpose.msra.mxu0 0.0
    %219 = vmatpush.xpose.msra.mxu0 0.0
    %220 = vmatpush.xpose.msra.mxu0 0.0
    %221 = vmatpush.xpose.msra.mxu0 0.0
    %222 = vmatpush.xpose.msra.mxu0 0.0
    %223 = vmatpush.xpose.msra.mxu0 0.0
    %224 = vmatpush.xpose.msra.mxu0 0.0
    %225 = vmatpush.xpose.msra.mxu0 0.0
    %226 = vmatpush.xpose.msra.mxu0 0.0
    %227 = vmatpush.xpose.msra.mxu0 %v211
    %228 = vmatpush.xpose.msra.mxu0 %v208
    %229 = vmatmul.f32.gmra.mxu0 %v205
    %v230 = vpop.f32.mrf.mxu0
    %v231 = vadd.f32 0.0, %v230
    %232 = vdwg.mxu0
    %v233 = vsel %vm174, %v202, -inf
    %234 = vmax.xlane.f32.xlu0 %v233
    %v235 = vpop.xlane.xlu0 %234
    %v236 = vsel %vm174, %v231, -inf
    %237 = vmax.xlane.f32.xlu0 %v236
    %v238 = vpop.xlane.xlu0 %237
    %v239 = vsub.f32 %v202, %v235
    %v240 = vsub.f32 %v231, %v238
    %v241 = vmul.f32 %v239, 1.442695
    %v242 = vpow.pop %v241
    %v243 = vmul.f32 %v240, 1.442695
    %v244 = vpow.pop %v243
    %v245 = vsel %vm174, %v242, 0.0
    %246 = vadd.xlane.f32.xlu0 %v245
    %v247 = vpop.xlane.xlu0 %246
    %v248 = vsel %vm174, %v244, 0.0
    %249 = vadd.xlane.f32.xlu0 %v248
    %v250 = vpop.xlane.xlu0 %249
    %v251 = vrcp.pop %v247
    %v252 = vmul.f32 %v247, %v251
    %v253 = vsub.f32 1.0, %v252
    %v254 = vmul.f32 %v251, %v253
    %v255 = vadd.f32 %v251, %v254
    %vm256 = vweird.f32 %v247
    %vm257 = vweird.f32 %v251
    %vm258 = vmor %vm256, %vm257
    %v259 = vsel %vm258, %v251, %v255
    %v260 = vand.u32 2147483647, %v247
    %vm261 = vcmp.eq.f32.partialorder %v260, 8.507059e+37
    %v262 = vand.u32 %v247, 2147483648
    %v263 = vor.u32 1.1754944e-38, %v262
    %v264 = vsel %vm261, %v263, %v259
    %v265 = vmul.f32 1.0, %v264
    %v266 = vrcp.pop %v250
    %v267 = vmul.f32 %v250, %v266
    %v268 = vsub.f32 1.0, %v267
    %v269 = vmul.f32 %v266, %v268
    %v270 = vadd.f32 %v266, %v269
    %vm271 = vweird.f32 %v250
    %vm272 = vweird.f32 %v266
    %vm273 = vmor %vm271, %vm272
    %v274 = vsel %vm273, %v266, %v270
    %v275 = vand.u32 2147483647, %v250
    %vm276 = vcmp.eq.f32.partialorder %v275, 8.507059e+37
    %v277 = vand.u32 %v250, 2147483648
    %v278 = vor.u32 1.1754944e-38, %v277
    %v279 = vsel %vm276, %v278, %v274
    %v280 = vmul.f32 1.0, %v279
    %281 = vrot.lane.b32.xlu0 %v163, 112
    %v282 = vpop.permute.xlu0 %281
    %283 = vrot.lane.b32.xlu0 %v166, 112
    %v284 = vpop.permute.xlu0 %283
    %v288 = vsel %vm174, %v242, 0
    %290 = vmatpush.msra.mxu0 0.0
    %291 = vmatpush.msra.mxu0 0.0
    %292 = vmatpush.msra.mxu0 0.0
    %293 = vmatpush.msra.mxu0 0.0
    %294 = vmatpush.msra.mxu0 0.0
    %295 = vmatpush.msra.mxu0 0.0
    %296 = vmatpush.msra.mxu0 0.0
    %297 = vmatpush.msra.mxu0 0.0
    %298 = vmatpush.msra.mxu0 0.0
    %299 = vmatpush.msra.mxu0 0.0
    %300 = vmatpush.msra.mxu0 0.0
    %301 = vmatpush.msra.mxu0 0.0
    %302 = vmatpush.msra.mxu0 0.0
    %303 = vmatpush.msra.mxu0 0.0
    %304 = vmatpush.msra.mxu0 %v284
    %305 = vmatpush.msra.mxu0 %v282
    %306 = vmatmul.f32.gmra.mxu0 %v288
    %v307 = vpop.f32.mrf.mxu0
    %v308 = vadd.f32 0.0, %v307
    %309 = vdwg.mxu0
    %310 = vrot.lane.b32.xlu0 %v169, 112
    %v311 = vpop.permute.xlu0 %310
    %312 = vrot.lane.b32.xlu0 %v172, 112
    %v313 = vpop.permute.xlu0 %312
    %v317 = vsel %vm174, %v244, 0
    %319 = vmatpush.msra.mxu0 0.0
    %320 = vmatpush.msra.mxu0 0.0
    %321 = vmatpush.msra.mxu0 0.0
    %322 = vmatpush.msra.mxu0 0.0
    %323 = vmatpush.msra.mxu0 0.0
    %324 = vmatpush.msra.mxu0 0.0
    %325 = vmatpush.msra.mxu0 0.0
    %326 = vmatpush.msra.mxu0 0.0
    %327 = vmatpush.msra.mxu0 0.0
    %328 = vmatpush.msra.mxu0 0.0
    %329 = vmatpush.msra.mxu0 0.0
    %330 = vmatpush.msra.mxu0 0.0
    %331 = vmatpush.msra.mxu0 0.0
    %332 = vmatpush.msra.mxu0 0.0
    %333 = vmatpush.msra.mxu0 %v313
    %334 = vmatpush.msra.mxu0 %v311
    %335 = vmatmul.f32.gmra.mxu0 %v317
    %v336 = vpop.f32.mrf.mxu0
    %v337 = vadd.f32 0.0, %v336
    %338 = vdwg.mxu0
    %v339 = vmul.f32 %v308, %v265
    %v340 = vmul.f32 %v337, %v280
    %341 = vrot.lane.b32.xlu0 %v108, 112
    %v342 = vpop.permute.xlu0 %341
    %v343 = vsel %vm174, %v342, 0
    %345 = vmatpush.xpose.msra.mxu0 0.0
    %346 = vmatpush.xpose.msra.mxu0 0.0
    %347 = vmatpush.xpose.msra.mxu0 0.0
    %348 = vmatpush.xpose.msra.mxu0 0.0
    %349 = vmatpush.xpose.msra.mxu0 0.0
    %350 = vmatpush.xpose.msra.mxu0 0.0
    %351 = vmatpush.xpose.msra.mxu0 0.0
    %352 = vmatpush.xpose.msra.mxu0 0.0
    %353 = vmatpush.xpose.msra.mxu0 0.0
    %354 = vmatpush.xpose.msra.mxu0 0.0
    %355 = vmatpush.xpose.msra.mxu0 0.0
    %356 = vmatpush.xpose.msra.mxu0 0.0
    %357 = vmatpush.xpose.msra.mxu0 0.0
    %358 = vmatpush.xpose.msra.mxu0 0.0
    %359 = vmatpush.xpose.msra.mxu0 %v182
    %360 = vmatpush.xpose.msra.mxu0 %v179
    %361 = vmatmul.f32.gmra.mxu0 %v343
    %v362 = vpop.f32.mrf.mxu0
    %v363 = vadd.f32 0.0, %v362
    %364 = vdwg.mxu0
    %365 = vrot.lane.b32.xlu0 %v111, 112
    %v366 = vpop.permute.xlu0 %365
    %v367 = vsel %vm174, %v366, 0
    %369 = vmatpush.xpose.msra.mxu0 0.0
    %370 = vmatpush.xpose.msra.mxu0 0.0
    %371 = vmatpush.xpose.msra.mxu0 0.0
    %372 = vmatpush.xpose.msra.mxu0 0.0
    %373 = vmatpush.xpose.msra.mxu0 0.0
    %374 = vmatpush.xpose.msra.mxu0 0.0
    %375 = vmatpush.xpose.msra.mxu0 0.0
    %376 = vmatpush.xpose.msra.mxu0 0.0
    %377 = vmatpush.xpose.msra.mxu0 0.0
    %378 = vmatpush.xpose.msra.mxu0 0.0
    %379 = vmatpush.xpose.msra.mxu0 0.0
    %380 = vmatpush.xpose.msra.mxu0 0.0
    %381 = vmatpush.xpose.msra.mxu0 0.0
    %382 = vmatpush.xpose.msra.mxu0 0.0
    %383 = vmatpush.xpose.msra.mxu0 %v211
    %384 = vmatpush.xpose.msra.mxu0 %v208
    %385 = vmatmul.f32.gmra.mxu0 %v367
    %v386 = vpop.f32.mrf.mxu0
    %v387 = vadd.f32 0.0, %v386
    %388 = vdwg.mxu0
    %v389 = vsel %vm174, %v363, -inf
    %390 = vmax.xlane.f32.xlu0 %v389
    %v391 = vpop.xlane.xlu0 %390
    %v392 = vsel %vm174, %v387, -inf
    %393 = vmax.xlane.f32.xlu0 %v392
    %v394 = vpop.xlane.xlu0 %393
    %v395 = vsub.f32 %v363, %v391
    %v396 = vsub.f32 %v387, %v394
    %v397 = vmul.f32 %v395, 1.442695
    %v398 = vpow.pop %v397
    %v399 = vmul.f32 %v396, 1.442695
    %v400 = vpow.pop %v399
    %v401 = vsel %vm174, %v398, 0.0
    %402 = vadd.xlane.f32.xlu0 %v401
    %v403 = vpop.xlane.xlu0 %402
    %v404 = vsel %vm174, %v400, 0.0
    %405 = vadd.xlane.f32.xlu0 %v404
    %v406 = vpop.xlane.xlu0 %405
    %v407 = vrcp.pop %v403
    %v408 = vmul.f32 %v403, %v407
    %v409 = vsub.f32 1.0, %v408
    %v410 = vmul.f32 %v407, %v409
    %v411 = vadd.f32 %v407, %v410
    %vm412 = vweird.f32 %v403
    %vm413 = vweird.f32 %v407
    %vm414 = vmor %vm412, %vm413
    %v415 = vsel %vm414, %v407, %v411
    %v416 = vand.u32 2147483647, %v403
    %vm417 = vcmp.eq.f32.partialorder %v416, 8.507059e+37
    %v418 = vand.u32 %v403, 2147483648
    %v419 = vor.u32 1.1754944e-38, %v418
    %v420 = vsel %vm417, %v419, %v415
    %v421 = vmul.f32 1.0, %v420
    %v422 = vrcp.pop %v406
    %v423 = vmul.f32 %v406, %v422
    %v424 = vsub.f32 1.0, %v423
    %v425 = vmul.f32 %v422, %v424
    %v426 = vadd.f32 %v422, %v425
    %vm427 = vweird.f32 %v406
    %vm428 = vweird.f32 %v422
    %vm429 = vmor %vm427, %vm428
    %v430 = vsel %vm429, %v422, %v426
    %v431 = vand.u32 2147483647, %v406
    %vm432 = vcmp.eq.f32.partialorder %v431, 8.507059e+37
    %v433 = vand.u32 %v406, 2147483648
    %v434 = vor.u32 1.1754944e-38, %v433
    %v435 = vsel %vm432, %v434, %v430
    %v436 = vmul.f32 1.0, %v435
    %v438 = vsel %vm174, %v398, 0
    %440 = vmatpush.msra.mxu0 0.0
    %441 = vmatpush.msra.mxu0 0.0
    %442 = vmatpush.msra.mxu0 0.0
    %443 = vmatpush.msra.mxu0 0.0
    %444 = vmatpush.msra.mxu0 0.0
    %445 = vmatpush.msra.mxu0 0.0
    %446 = vmatpush.msra.mxu0 0.0
    %447 = vmatpush.msra.mxu0 0.0
    %448 = vmatpush.msra.mxu0 0.0
    %449 = vmatpush.msra.mxu0 0.0
    %450 = vmatpush.msra.mxu0 0.0
    %451 = vmatpush.msra.mxu0 0.0
    %452 = vmatpush.msra.mxu0 0.0
    %453 = vmatpush.msra.mxu0 0.0
    %454 = vmatpush.msra.mxu0 %v284
    %455 = vmatpush.msra.mxu0 %v282
    %456 = vmatmul.f32.gmra.mxu0 %v438
    %v457 = vpop.f32.mrf.mxu0
    %v458 = vadd.f32 0.0, %v457
    %459 = vdwg.mxu0
    %v461 = vsel %vm174, %v400, 0
    %463 = vmatpush.msra.mxu0 0.0
    %464 = vmatpush.msra.mxu0 0.0
    %465 = vmatpush.msra.mxu0 0.0
    %466 = vmatpush.msra.mxu0 0.0
    %467 = vmatpush.msra.mxu0 0.0
    %468 = vmatpush.msra.mxu0 0.0
    %469 = vmatpush.msra.mxu0 0.0
    %470 = vmatpush.msra.mxu0 0.0
    %471 = vmatpush.msra.mxu0 0.0
    %472 = vmatpush.msra.mxu0 0.0
    %473 = vmatpush.msra.mxu0 0.0
    %474 = vmatpush.msra.mxu0 0.0
    %475 = vmatpush.msra.mxu0 0.0
    %476 = vmatpush.msra.mxu0 0.0
    %477 = vmatpush.msra.mxu0 %v313
    %478 = vmatpush.msra.mxu0 %v311
    %479 = vmatmul.f32.gmra.mxu0 %v461
    %v480 = vpop.f32.mrf.mxu0
    %v481 = vadd.f32 0.0, %v480
    %482 = vdwg.mxu0
    %v483 = vmul.f32 %v458, %v421
    %v484 = vmul.f32 %v481, %v436
    %v486 = vsel %vm174, %v483, 0
    %v489 = vsel %vm174, %v484, 0
    %491 = vmatpush.msra.mxu0 0.0
    %492 = vmatpush.msra.mxu0 0.0
    %493 = vmatpush.msra.mxu0 0.0
    %494 = vmatpush.msra.mxu0 0.0
    %495 = vmatpush.msra.mxu0 0.0
    %496 = vmatpush.msra.mxu0 0.0
    %497 = vmatpush.msra.mxu0 0.0
    %498 = vmatpush.msra.mxu0 0.0
    %499 = vmatpush.msra.mxu0 0.0
    %500 = vmatpush.msra.mxu0 0.0
    %501 = vmatpush.msra.mxu0 0.0
    %502 = vmatpush.msra.mxu0 0.0
    %503 = vmatpush.msra.mxu0 0.0
    %504 = vmatpush.msra.mxu0 0.0
    %505 = vmatpush.msra.mxu0 %v79
    %506 = vmatpush.msra.mxu0 %v78
    %507 = vmatmul.f32.gmra.mxu0 %v486
    %v508 = vpop.f32.mrf.mxu0
    %v509 = vadd.f32 0.0, %v508
    %510 = vmatmul.f32.gmra.mxu0 %v489
    %v511 = vpop.f32.mrf.mxu0
    %v512 = vadd.f32 0.0, %v511
    %513 = vdwg.mxu0
    %v515 = vsel %vm174, %v339, 0
    %v518 = vsel %vm174, %v340, 0
    %520 = vmatpush.msra.mxu0 0.0
    %521 = vmatpush.msra.mxu0 0.0
    %522 = vmatpush.msra.mxu0 0.0
    %523 = vmatpush.msra.mxu0 0.0
    %524 = vmatpush.msra.mxu0 0.0
    %525 = vmatpush.msra.mxu0 0.0
    %526 = vmatpush.msra.mxu0 0.0
    %527 = vmatpush.msra.mxu0 0.0
    %528 = vmatpush.msra.mxu0 0.0
    %529 = vmatpush.msra.mxu0 0.0
    %530 = vmatpush.msra.mxu0 0.0
    %531 = vmatpush.msra.mxu0 0.0
    %532 = vmatpush.msra.mxu0 0.0
    %533 = vmatpush.msra.mxu0 0.0
    %534 = vmatpush.msra.mxu0 %v77
    %535 = vmatpush.msra.mxu0 %v76
    %536 = vmatmul.f32.gmra.mxu0 %v515
    %v537 = vpop.f32.mrf.mxu0
    %v538 = vadd.f32 %v509, %v537
    %539 = vmatmul.f32.gmra.mxu0 %v518
    %v540 = vpop.f32.mrf.mxu0
    %v541 = vadd.f32 %v512, %v540
    %542 = vdwg.mxu0
    %543 = vrot.lane.b32.xlu0 %v108, 96
    %v544 = vpop.permute.xlu0 %543
    %v545 = vsel %vm174, %v544, 0
    %547 = vmatpush.xpose.msra.mxu0 0.0
    %548 = vmatpush.xpose.msra.mxu0 0.0
    %549 = vmatpush.xpose.msra.mxu0 0.0
    %550 = vmatpush.xpose.msra.mxu0 0.0
    %551 = vmatpush.xpose.msra.mxu0 0.0
    %552 = vmatpush.xpose.msra.mxu0 0.0
    %553 = vmatpush.xpose.msra.mxu0 0.0
    %554 = vmatpush.xpose.msra.mxu0 0.0
    %555 = vmatpush.xpose.msra.mxu0 0.0
    %556 = vmatpush.xpose.msra.mxu0 0.0
    %557 = vmatpush.xpose.msra.mxu0 0.0
    %558 = vmatpush.xpose.msra.mxu0 0.0
    %559 = vmatpush.xpose.msra.mxu0 0.0
    %560 = vmatpush.xpose.msra.mxu0 0.0
    %561 = vmatpush.xpose.msra.mxu0 %v182
    %562 = vmatpush.xpose.msra.mxu0 %v179
    %563 = vmatmul.f32.gmra.mxu0 %v545
    %v564 = vpop.f32.mrf.mxu0
    %v565 = vadd.f32 0.0, %v564
    %566 = vdwg.mxu0
    %567 = vrot.lane.b32.xlu0 %v111, 96
    %v568 = vpop.permute.xlu0 %567
    %v569 = vsel %vm174, %v568, 0
    %571 = vmatpush.xpose.msra.mxu0 0.0
    %572 = vmatpush.xpose.msra.mxu0 0.0
    %573 = vmatpush.xpose.msra.mxu0 0.0
    %574 = vmatpush.xpose.msra.mxu0 0.0
    %575 = vmatpush.xpose.msra.mxu0 0.0
    %576 = vmatpush.xpose.msra.mxu0 0.0
    %577 = vmatpush.xpose.msra.mxu0 0.0
    %578 = vmatpush.xpose.msra.mxu0 0.0
    %579 = vmatpush.xpose.msra.mxu0 0.0
    %580 = vmatpush.xpose.msra.mxu0 0.0
    %581 = vmatpush.xpose.msra.mxu0 0.0
    %582 = vmatpush.xpose.msra.mxu0 0.0
    %583 = vmatpush.xpose.msra.mxu0 0.0
    %584 = vmatpush.xpose.msra.mxu0 0.0
    %585 = vmatpush.xpose.msra.mxu0 %v211
    %586 = vmatpush.xpose.msra.mxu0 %v208
    %587 = vmatmul.f32.gmra.mxu0 %v569
    %v588 = vpop.f32.mrf.mxu0
    %v589 = vadd.f32 0.0, %v588
    %590 = vdwg.mxu0
    %v591 = vsel %vm174, %v565, -inf
    %592 = vmax.xlane.f32.xlu0 %v591
    %v593 = vpop.xlane.xlu0 %592
    %v594 = vsel %vm174, %v589, -inf
    %595 = vmax.xlane.f32.xlu0 %v594
    %v596 = vpop.xlane.xlu0 %595
    %v597 = vsub.f32 %v565, %v593
    %v598 = vsub.f32 %v589, %v596
    %v599 = vmul.f32 %v597, 1.442695
    %v600 = vpow.pop %v599
    %v601 = vmul.f32 %v598, 1.442695
    %v602 = vpow.pop %v601
    %v603 = vsel %vm174, %v600, 0.0
    %604 = vadd.xlane.f32.xlu0 %v603
    %v605 = vpop.xlane.xlu0 %604
    %v606 = vsel %vm174, %v602, 0.0
    %607 = vadd.xlane.f32.xlu0 %v606
    %v608 = vpop.xlane.xlu0 %607
    %v609 = vrcp.pop %v605
    %v610 = vmul.f32 %v605, %v609
    %v611 = vsub.f32 1.0, %v610
    %v612 = vmul.f32 %v609, %v611
    %v613 = vadd.f32 %v609, %v612
    %vm614 = vweird.f32 %v605
    %vm615 = vweird.f32 %v609
    %vm616 = vmor %vm614, %vm615
    %v617 = vsel %vm616, %v609, %v613
    %v618 = vand.u32 2147483647, %v605
    %vm619 = vcmp.eq.f32.partialorder %v618, 8.507059e+37
    %v620 = vand.u32 %v605, 2147483648
    %v621 = vor.u32 1.1754944e-38, %v620
    %v622 = vsel %vm619, %v621, %v617
    %v623 = vmul.f32 1.0, %v622
    %v624 = vrcp.pop %v608
    %v625 = vmul.f32 %v608, %v624
    %v626 = vsub.f32 1.0, %v625
    %v627 = vmul.f32 %v624, %v626
    %v628 = vadd.f32 %v624, %v627
    %vm629 = vweird.f32 %v608
    %vm630 = vweird.f32 %v624
    %vm631 = vmor %vm629, %vm630
    %v632 = vsel %vm631, %v624, %v628
    %v633 = vand.u32 2147483647, %v608
    %vm634 = vcmp.eq.f32.partialorder %v633, 8.507059e+37
    %v635 = vand.u32 %v608, 2147483648
    %v636 = vor.u32 1.1754944e-38, %v635
    %v637 = vsel %vm634, %v636, %v632
    %v638 = vmul.f32 1.0, %v637
    %v640 = vsel %vm174, %v600, 0
    %642 = vmatpush.msra.mxu0 0.0
    %643 = vmatpush.msra.mxu0 0.0
    %644 = vmatpush.msra.mxu0 0.0
    %645 = vmatpush.msra.mxu0 0.0
    %646 = vmatpush.msra.mxu0 0.0
    %647 = vmatpush.msra.mxu0 0.0
    %648 = vmatpush.msra.mxu0 0.0
    %649 = vmatpush.msra.mxu0 0.0
    %650 = vmatpush.msra.mxu0 0.0
    %651 = vmatpush.msra.mxu0 0.0
    %652 = vmatpush.msra.mxu0 0.0
    %653 = vmatpush.msra.mxu0 0.0
    %654 = vmatpush.msra.mxu0 0.0
    %655 = vmatpush.msra.mxu0 0.0
    %656 = vmatpush.msra.mxu0 %v284
    %657 = vmatpush.msra.mxu0 %v282
    %658 = vmatmul.f32.gmra.mxu0 %v640
    %v659 = vpop.f32.mrf.mxu0
    %v660 = vadd.f32 0.0, %v659
    %661 = vdwg.mxu0
    %v663 = vsel %vm174, %v602, 0
    %665 = vmatpush.msra.mxu0 0.0
    %666 = vmatpush.msra.mxu0 0.0
    %667 = vmatpush.msra.mxu0 0.0
    %668 = vmatpush.msra.mxu0 0.0
    %669 = vmatpush.msra.mxu0 0.0
    %670 = vmatpush.msra.mxu0 0.0
    %671 = vmatpush.msra.mxu0 0.0
    %672 = vmatpush.msra.mxu0 0.0
    %673 = vmatpush.msra.mxu0 0.0
    %674 = vmatpush.msra.mxu0 0.0
    %675 = vmatpush.msra.mxu0 0.0
    %676 = vmatpush.msra.mxu0 0.0
    %677 = vmatpush.msra.mxu0 0.0
    %678 = vmatpush.msra.mxu0 0.0
    %679 = vmatpush.msra.mxu0 %v313
    %680 = vmatpush.msra.mxu0 %v311
    %681 = vmatmul.f32.gmra.mxu0 %v663
    %v682 = vpop.f32.mrf.mxu0
    %v683 = vadd.f32 0.0, %v682
    %684 = vdwg.mxu0
    %v685 = vmul.f32 %v660, %v623
    %v686 = vmul.f32 %v683, %v638
    %v688 = vsel %vm174, %v685, 0
    %v691 = vsel %vm174, %v686, 0
    %693 = vmatpush.msra.mxu0 0.0
    %694 = vmatpush.msra.mxu0 0.0
    %695 = vmatpush.msra.mxu0 0.0
    %696 = vmatpush.msra.mxu0 0.0
    %697 = vmatpush.msra.mxu0 0.0
    %698 = vmatpush.msra.mxu0 0.0
    %699 = vmatpush.msra.mxu0 0.0
    %700 = vmatpush.msra.mxu0 0.0
    %701 = vmatpush.msra.mxu0 0.0
    %702 = vmatpush.msra.mxu0 0.0
    %703 = vmatpush.msra.mxu0 0.0
    %704 = vmatpush.msra.mxu0 0.0
    %705 = vmatpush.msra.mxu0 0.0
    %706 = vmatpush.msra.mxu0 0.0
    %707 = vmatpush.msra.mxu0 %v81
    %708 = vmatpush.msra.mxu0 %v80
    %709 = vmatmul.f32.gmra.mxu0 %v688
    %v710 = vpop.f32.mrf.mxu0
    %v711 = vadd.f32 0.0, %v710
    %712 = vmatmul.f32.gmra.mxu0 %v691
    %v713 = vpop.f32.mrf.mxu0
    %v714 = vadd.f32 0.0, %v713
    %715 = vdwg.mxu0
    %v716 = vadd.f32 %v538, %v711
    %v717 = vadd.f32 %v541, %v714
    %718 = vrot.lane.b32.xlu0 %v108, 80
    %v719 = vpop.permute.xlu0 %718
    %v720 = vsel %vm174, %v719, 0
    %722 = vmatpush.xpose.msra.mxu0 0.0
    %723 = vmatpush.xpose.msra.mxu0 0.0
    %724 = vmatpush.xpose.msra.mxu0 0.0
    %725 = vmatpush.xpose.msra.mxu0 0.0
    %726 = vmatpush.xpose.msra.mxu0 0.0
    %727 = vmatpush.xpose.msra.mxu0 0.0
    %728 = vmatpush.xpose.msra.mxu0 0.0
    %729 = vmatpush.xpose.msra.mxu0 0.0
    %730 = vmatpush.xpose.msra.mxu0 0.0
    %731 = vmatpush.xpose.msra.mxu0 0.0
    %732 = vmatpush.xpose.msra.mxu0 0.0
    %733 = vmatpush.xpose.msra.mxu0 0.0
    %734 = vmatpush.xpose.msra.mxu0 0.0
    %735 = vmatpush.xpose.msra.mxu0 0.0
    %736 = vmatpush.xpose.msra.mxu0 %v182
    %737 = vmatpush.xpose.msra.mxu0 %v179
    %738 = vmatmul.f32.gmra.mxu0 %v720
    %v739 = vpop.f32.mrf.mxu0
    %v740 = vadd.f32 0.0, %v739
    %741 = vdwg.mxu0
    %742 = vrot.lane.b32.xlu0 %v111, 80
    %v743 = vpop.permute.xlu0 %742
    %v744 = vsel %vm174, %v743, 0
    %746 = vmatpush.xpose.msra.mxu0 0.0
    %747 = vmatpush.xpose.msra.mxu0 0.0
    %748 = vmatpush.xpose.msra.mxu0 0.0
    %749 = vmatpush.xpose.msra.mxu0 0.0
    %750 = vmatpush.xpose.msra.mxu0 0.0
    %751 = vmatpush.xpose.msra.mxu0 0.0
    %752 = vmatpush.xpose.msra.mxu0 0.0
    %753 = vmatpush.xpose.msra.mxu0 0.0
    %754 = vmatpush.xpose.msra.mxu0 0.0
    %755 = vmatpush.xpose.msra.mxu0 0.0
    %756 = vmatpush.xpose.msra.mxu0 0.0
    %757 = vmatpush.xpose.msra.mxu0 0.0
    %758 = vmatpush.xpose.msra.mxu0 0.0
    %759 = vmatpush.xpose.msra.mxu0 0.0
    %760 = vmatpush.xpose.msra.mxu0 %v211
    %761 = vmatpush.xpose.msra.mxu0 %v208
    %762 = vmatmul.f32.gmra.mxu0 %v744
    %v763 = vpop.f32.mrf.mxu0
    %v764 = vadd.f32 0.0, %v763
    %765 = vdwg.mxu0
    %v766 = vsel %vm174, %v740, -inf
    %767 = vmax.xlane.f32.xlu0 %v766
    %v768 = vpop.xlane.xlu0 %767
    %v769 = vsel %vm174, %v764, -inf
    %770 = vmax.xlane.f32.xlu0 %v769
    %v771 = vpop.xlane.xlu0 %770
    %v772 = vsub.f32 %v740, %v768
    %v773 = vsub.f32 %v764, %v771
    %v774 = vmul.f32 %v772, 1.442695
    %v775 = vpow.pop %v774
    %v776 = vmul.f32 %v773, 1.442695
    %v777 = vpow.pop %v776
    %v778 = vsel %vm174, %v775, 0.0
    %779 = vadd.xlane.f32.xlu0 %v778
    %v780 = vpop.xlane.xlu0 %779
    %v781 = vsel %vm174, %v777, 0.0
    %782 = vadd.xlane.f32.xlu0 %v781
    %v783 = vpop.xlane.xlu0 %782
    %v784 = vrcp.pop %v780
    %v785 = vmul.f32 %v780, %v784
    %v786 = vsub.f32 1.0, %v785
    %v787 = vmul.f32 %v784, %v786
    %v788 = vadd.f32 %v784, %v787
    %vm789 = vweird.f32 %v780
    %vm790 = vweird.f32 %v784
    %vm791 = vmor %vm789, %vm790
    %v792 = vsel %vm791, %v784, %v788
    %v793 = vand.u32 2147483647, %v780
    %vm794 = vcmp.eq.f32.partialorder %v793, 8.507059e+37
    %v795 = vand.u32 %v780, 2147483648
    %v796 = vor.u32 1.1754944e-38, %v795
    %v797 = vsel %vm794, %v796, %v792
    %v798 = vmul.f32 1.0, %v797
    %v799 = vrcp.pop %v783
    %v800 = vmul.f32 %v783, %v799
    %v801 = vsub.f32 1.0, %v800
    %v802 = vmul.f32 %v799, %v801
    %v803 = vadd.f32 %v799, %v802
    %vm804 = vweird.f32 %v783
    %vm805 = vweird.f32 %v799
    %vm806 = vmor %vm804, %vm805
    %v807 = vsel %vm806, %v799, %v803
    %v808 = vand.u32 2147483647, %v783
    %vm809 = vcmp.eq.f32.partialorder %v808, 8.507059e+37
    %v810 = vand.u32 %v783, 2147483648
    %v811 = vor.u32 1.1754944e-38, %v810
    %v812 = vsel %vm809, %v811, %v807
    %v813 = vmul.f32 1.0, %v812
    %v815 = vsel %vm174, %v775, 0
    %817 = vmatpush.msra.mxu0 0.0
    %818 = vmatpush.msra.mxu0 0.0
    %819 = vmatpush.msra.mxu0 0.0
    %820 = vmatpush.msra.mxu0 0.0
    %821 = vmatpush.msra.mxu0 0.0
    %822 = vmatpush.msra.mxu0 0.0
    %823 = vmatpush.msra.mxu0 0.0
    %824 = vmatpush.msra.mxu0 0.0
    %825 = vmatpush.msra.mxu0 0.0
    %826 = vmatpush.msra.mxu0 0.0
    %827 = vmatpush.msra.mxu0 0.0
    %828 = vmatpush.msra.mxu0 0.0
    %829 = vmatpush.msra.mxu0 0.0
    %830 = vmatpush.msra.mxu0 0.0
    %831 = vmatpush.msra.mxu0 %v284
    %832 = vmatpush.msra.mxu0 %v282
    %833 = vmatmul.f32.gmra.mxu0 %v815
    %v834 = vpop.f32.mrf.mxu0
    %v835 = vadd.f32 0.0, %v834
    %836 = vdwg.mxu0
    %v838 = vsel %vm174, %v777, 0
    %840 = vmatpush.msra.mxu0 0.0
    %841 = vmatpush.msra.mxu0 0.0
    %842 = vmatpush.msra.mxu0 0.0
    %843 = vmatpush.msra.mxu0 0.0
    %844 = vmatpush.msra.mxu0 0.0
    %845 = vmatpush.msra.mxu0 0.0
    %846 = vmatpush.msra.mxu0 0.0
    %847 = vmatpush.msra.mxu0 0.0
    %848 = vmatpush.msra.mxu0 0.0
    %849 = vmatpush.msra.mxu0 0.0
    %850 = vmatpush.msra.mxu0 0.0
    %851 = vmatpush.msra.mxu0 0.0
    %852 = vmatpush.msra.mxu0 0.0
    %853 = vmatpush.msra.mxu0 0.0
    %854 = vmatpush.msra.mxu0 %v313
    %855 = vmatpush.msra.mxu0 %v311
    %856 = vmatmul.f32.gmra.mxu0 %v838
    %v857 = vpop.f32.mrf.mxu0
    %v858 = vadd.f32 0.0, %v857
    %859 = vdwg.mxu0
    %v860 = vmul.f32 %v835, %v798
    %v861 = vmul.f32 %v858, %v813
    %v863 = vsel %vm174, %v860, 0
    %v866 = vsel %vm174, %v861, 0
    %868 = vmatpush.msra.mxu0 0.0
    %869 = vmatpush.msra.mxu0 0.0
    %870 = vmatpush.msra.mxu0 0.0
    %871 = vmatpush.msra.mxu0 0.0
    %872 = vmatpush.msra.mxu0 0.0
    %873 = vmatpush.msra.mxu0 0.0
    %874 = vmatpush.msra.mxu0 0.0
    %875 = vmatpush.msra.mxu0 0.0
    %876 = vmatpush.msra.mxu0 0.0
    %877 = vmatpush.msra.mxu0 0.0
    %878 = vmatpush.msra.mxu0 0.0
    %879 = vmatpush.msra.mxu0 0.0
    %880 = vmatpush.msra.mxu0 0.0
    %881 = vmatpush.msra.mxu0 0.0
    %882 = vmatpush.msra.mxu0 %v83
    %883 = vmatpush.msra.mxu0 %v82
    %884 = vmatmul.f32.gmra.mxu0 %v863
    %v885 = vpop.f32.mrf.mxu0
    %v886 = vadd.f32 0.0, %v885
    %887 = vmatmul.f32.gmra.mxu0 %v866
    %v888 = vpop.f32.mrf.mxu0
    %v889 = vadd.f32 0.0, %v888
    %890 = vdwg.mxu0
    %v891 = vadd.f32 %v716, %v886
    %v892 = vadd.f32 %v717, %v889
    %893 = vst.msk [vmem:[#allocation2] sm:$0xff] %vm20, %v891
    %894 = vst.msk [vmem:[#allocation2 + $0x8] sm:$0xff] %vm20, %v892
    // Predicated region
    $region18: #{cross_attention.1} parent=1 // pred_check
      _
    $region19: #{cross_attention.1} parent=1 // pred_check_branch
      %896 = sbr.rel (0) target = $region21
    $region20: #{cross_attention.1} parent=1 // pred_region
      %898 = vsyncadd [#allocation3], 0
      %s899 = sshll.u32 [#allocation2], 4
      %s900 = int_to_ptr.vmem [resolvable:$true] %s899
      %s901 = sshll.u32 %s4, 4
      %s902 = int_to_ptr.hbm [resolvable:$true] %s901
      %907 = dma.vmem_to_hbm [thread:$0]  %s900, 256, %s902, [#allocation3], 128, 128, 8
    $region21: #{cross_attention.1} parent=1 // pred_fallthru
      _
    // Predicated region
    $region22: #{cross_attention.1} parent=1 // pred_check
      _
    $region23: #{cross_attention.1} parent=1 // pred_check_branch
      %909 = sbr.rel (0) target = $region25
    $region24: #{cross_attention.1} parent=1 // pred_region
      %911 = dma.done [#allocation3], 256
    $region25: #{cross_attention.1} parent=1 // pred_fallthru
      _
    %912 = vsyncpa [#allocation3], 1

</llo_original>
